<compile_context>
chip_gen: v7x
topology: tpu7x:2x2x1
jax: 0.10.0
libtpu: 0.0.40
codegen_flags: <defaults>
</compile_context>

<pallas_src>
from functools import partial

import jax
import jax.numpy as jnp
from jax.experimental import pallas as pl
from jax.experimental.pallas import tpu as pltpu

_LANES = 128


def _round_up(n, m):
    return ((n + m - 1) // m) * m


def _make_kernel(n_layers, H, use_vpu_final):
    """Kernel body for one (feature, TB) batch tile (batch in lanes)."""

    def kernel(Xs_ref, Wx_ref, b0_ref, WihS_ref, bsum_ref, gact_ref,
               Wf_ref, bf_ref, out_ref):
        cdt = WihS_ref.dtype
        Xs = Xs_ref[...]                                        # (D1p, TB) compute dt

        # Merged MXU pass: initial dense layer + layer-0 X-path gates.
        xs_prod = jnp.dot(Wx_ref[...], Xs,
                          preferred_element_type=jnp.float32)   # (4H, TB) f32
        S = jnp.tanh(xs_prod[0:H, :] + b0_ref[...])             # (H, TB)
        x_gates = xs_prod[H:4 * H, :]                           # (3H, TB)

        # Per-row affine constants for the fused gate nonlinearity:
        #   act = off + post * tanh(pre * gates)
        # i/o rows: sigmoid(x) = 0.5 + 0.5*tanh(0.5*x);  g rows: tanh(x).
        pre = gact_ref[0]                                       # (3H, 1)
        post = gact_ref[1]
        off = gact_ref[2]

        # LSTM over a length-1 sequence with zero initial (h, c).
        # Gate order [i, g, o]; forget gate removed (it multiplies c0 == 0).
        h = S
        for l in range(n_layers):
            gates = jnp.dot(WihS_ref[l], h.astype(cdt),
                            preferred_element_type=jnp.float32) + bsum_ref[l]
            if l == 0:
                gates = gates + x_gates
            act = off + post * jnp.tanh(pre * gates)            # ONE full-width tanh
            i_g = act[0:H, :]
            g_g = act[H:2 * H, :]
            o_g = act[2 * H:3 * H, :]
            h = o_g * jnp.tanh(i_g * g_g)                       # c = i*g, h = o*tanh(c)

        # Final DenseLayer (final_activation=None); lane-dense (out_p, TB) output.
        if use_vpu_final:
            out_ref[...] = (jnp.sum(h * Wf_ref[...], axis=0, keepdims=True)
                            + bf_ref[...])
        else:
            out_ref[...] = (jnp.dot(Wf_ref[...], h.astype(Wf_ref.dtype),
                                    preferred_element_type=jnp.float32)
                            + bf_ref[...])

    return kernel


@partial(jax.jit, static_argnames=("block_rows", "compute_dtype"))
def neuralnet_forward(t, x, W0, b0, WihS, WihX, bsum, Wf, bf, *,
                      block_rows=4096, compute_dtype=jnp.bfloat16):
    """NeuralNet.forward (LSTM branch, regression) with a batch-tiled Pallas kernel."""
    # --- preprocess_input: MinMaxScaler statistics are GLOBAL over the batch, so the
    #     min/max reduction and scaling are hoisted here (one fused XLA pass); the
    #     kernel then tiles the batch freely.
    X = jnp.concatenate([t, x], axis=1).astype(jnp.float32)          # (B, D1)
    B, D1 = X.shape
    H = W0.shape[1]
    L = WihS.shape[0]
    out_dim = bf.shape[1]

    xmin = jnp.min(X, axis=0, keepdims=True)
    xmax = jnp.max(X, axis=0, keepdims=True)
    rng = xmax - xmin
    rng = jnp.where(rng == 0.0, jnp.ones_like(rng), rng)             # sklearn zero-range
    Xs = (X - xmin) / rng

    # --- feature-major tiling: batch in the lane dimension -----------------------
    sub = 8 if jnp.dtype(compute_dtype).itemsize == 4 else 16        # f32 / bf16 tiles
    D1p = _round_up(D1, sub)

    ntiles = max(1, -(-B // block_rows))
    if B > 2 * _LANES:
        ntiles = max(ntiles, 2)          # v7x: >=2 programs so both TensorCores work
    TB = _round_up(-(-B // ntiles), _LANES)
    B_pad = _round_up(B, TB)
    num_tiles = B_pad // TB

    Xs_t = jnp.pad(Xs.T, ((0, D1p - D1), (0, B_pad - B))).astype(compute_dtype)

    # Merged [W0 | WihX] -> one (4H, D1p) MXU weight; the rest transposed feature-major.
    Wx = jnp.concatenate([W0, WihX], axis=1)                          # (D1, 4H)
    Wx_t = jnp.pad(Wx.T, ((0, 0), (0, D1p - D1))).astype(compute_dtype)
    b0_t = b0.reshape(H, 1).astype(jnp.float32)
    WihS_t = jnp.transpose(WihS, (0, 2, 1)).astype(compute_dtype)     # (L, 3H, H)
    bsum_t = jnp.transpose(bsum, (0, 2, 1)).astype(jnp.float32)       # (L, 3H, 1)

    # Per-gate-row affine constants for sigmoid-via-tanh fusion (gate order [i, g, o]).
    row = jnp.arange(3 * H)[:, None]
    is_sig = (row < H) | (row >= 2 * H)
    pre = jnp.where(is_sig, 0.5, 1.0).astype(jnp.float32)
    off = jnp.where(is_sig, 0.5, 0.0).astype(jnp.float32)
    gact = jnp.stack([pre, pre, off])                                 # (3, 3H, 1)

    use_vpu_final = (out_dim == 1)
    if use_vpu_final:
        out_p = 1
        Wf_t = Wf.reshape(H, 1).astype(jnp.float32)
        bf_t = bf.reshape(1, 1).astype(jnp.float32)
    else:
        out_p = _round_up(out_dim, 8)
        Wf_t = jnp.pad(Wf.T, ((0, out_p - out_dim), (0, 0))).astype(compute_dtype)
        bf_t = jnp.pad(bf.T, ((0, out_p - out_dim), (0, 0))).astype(jnp.float32)

    kernel = _make_kernel(L, H, use_vpu_final)

    out = pl.pallas_call(
        kernel,
        out_shape=jax.ShapeDtypeStruct((out_p, B_pad), jnp.float32),
        grid=(num_tiles,),
        in_specs=[
            pl.BlockSpec((D1p, TB), lambda i: (0, i)),        # batch-tiled input
            pl.BlockSpec(Wx_t.shape, lambda i: (0, 0)),       # weights: resident
            pl.BlockSpec(b0_t.shape, lambda i: (0, 0)),
            pl.BlockSpec(WihS_t.shape, lambda i: (0, 0, 0)),
            pl.BlockSpec(bsum_t.shape, lambda i: (0, 0, 0)),
            pl.BlockSpec(gact.shape, lambda i: (0, 0, 0)),
            pl.BlockSpec(Wf_t.shape, lambda i: (0, 0)),
            pl.BlockSpec(bf_t.shape, lambda i: (0, 0)),
        ],
        out_specs=pl.BlockSpec((out_p, TB), lambda i: (0, i)),  # lane-dense output
        compiler_params=pltpu.CompilerParams(
            # TODO(synk): on v7x, pltpu.CORE_PARALLEL / an explicit core_map can be
            # used here to force the 2-TC split; "parallel" + grid>=2 is the portable
            # choice across v5e/v6e/v7x.
            dimension_semantics=("parallel",),
            vmem_limit_bytes=32 * 1024 * 1024,    # safe on v5e..v7x; raise with TB on v5e/v6e
        ),
    )(Xs_t, Wx_t, b0_t, WihS_t, bsum_t, gact, Wf_t, bf_t)

    return out[:out_dim, :B].T                                  # back to (B, out_dim)


def init_params(key, layer_width, n_layers, input_dim, output_dim):
    """Deterministic synthetic parameters in the logical layout (see header)."""
    H = layer_width
    D1 = input_dim + 1
    ks = jax.random.split(key, 6)
    # initial DenseLayer (xavier_normal weight, small uniform bias)
    std0 = (2.0 / (D1 + H)) ** 0.5
    W0 = std0 * jax.random.normal(ks[0], (D1, H), jnp.float32)
    b0 = (1.0 / D1 ** 0.5) * jax.random.uniform(ks[1], (1, H), jnp.float32, -1.0, 1.0)
    # LSTM: uniform(-1/sqrt(H), 1/sqrt(H)); gate order [i, g, o] (f-gate dropped).
    k = 1.0 / H ** 0.5
    kk = jax.random.split(ks[2], n_layers * 3 + 1)
    WihX = jax.random.uniform(kk[-1], (D1, 3 * H), jnp.float32, -k, k)
    wihS, bsum_l = [], []
    for l in range(n_layers):
        wihS.append(jax.random.uniform(kk[3 * l], (H, 3 * H), jnp.float32, -k, k))
        b_ih = jax.random.uniform(kk[3 * l + 1], (3 * H,), jnp.float32, -k, k)
        b_hh = jax.random.uniform(kk[3 * l + 2], (3 * H,), jnp.float32, -k, k)
        bsum_l.append((b_ih + b_hh)[None, :])
    WihS = jnp.stack(wihS)                  # (n_layers, H, 3H)
    bsum = jnp.stack(bsum_l)                # (n_layers, 1, 3H)
    # final DenseLayer
    stdf = (2.0 / (H + output_dim)) ** 0.5
    Wf = stdf * jax.random.normal(ks[3], (H, output_dim), jnp.float32)
    bf = (1.0 / H ** 0.5) * jax.random.uniform(ks[4], (1, output_dim), jnp.float32,
                                               -1.0, 1.0)
    return W0, b0, WihS, WihX, bsum, Wf, bf


def reference_forward(t, x, W0, b0, WihS, WihX, bsum, Wf, bf,
                      compute_dtype=jnp.float32):
    """Pure-JAX reference (batch-major, concat form, as in the PyTorch module)."""
    X = jnp.concatenate([t, x], axis=1).astype(jnp.float32)
    xmin = X.min(0, keepdims=True)
    xmax = X.max(0, keepdims=True)
    rng = jnp.where(xmax - xmin == 0.0, 1.0, xmax - xmin)
    Xs = ((X - xmin) / rng).astype(compute_dtype)
    H = W0.shape[1]
    S = jnp.tanh(jnp.dot(Xs, W0.astype(compute_dtype),
                         preferred_element_type=jnp.float32) + b0)
    h = S
    for l in range(WihS.shape[0]):
        if l == 0:
            inp = jnp.concatenate([h, Xs.astype(h.dtype)], axis=1)   # cat([S, X])
            W = jnp.concatenate([WihS[0], WihX], axis=0)
        else:
            inp, W = h, WihS[l]
        gates = jnp.dot(inp.astype(compute_dtype), W.astype(compute_dtype),
                        preferred_element_type=jnp.float32) + bsum[l]
        i = jax.nn.sigmoid(gates[:, :H])
        g = jnp.tanh(gates[:, H:2 * H])
        o = jax.nn.sigmoid(gates[:, 2 * H:])
        h = o * jnp.tanh(i * g)             # c0 = 0  =>  c = i*g (f-gate drops out)
    return jnp.dot(h, Wf, preferred_element_type=jnp.float32) + bf


# TODO(synk): only the default typeNN='LSTM' regression branch is implemented;
# 'Dense' and 'Transformer' branches and the classification argmax path are not.

if __name__ == "__main__":
    input_dim, layer_width, n_layers = 3, 32, 2
    key = jax.random.PRNGKey(0)
    kt, kx, kp = jax.random.split(key, 3)
    params = init_params(kp, layer_width, n_layers, input_dim, 1)

    # Case 1: tiny batch, single tile, f32 compute (faithful to the PyTorch module
    # up to the exact-sigma sigmoid-via-tanh identity).
    B = 8
    t = jax.random.uniform(kt, (B, 1), jnp.float32)
    x = jax.random.normal(kx, (B, input_dim), jnp.float32)
    out_f32 = neuralnet_forward(t, x, *params, compute_dtype=jnp.float32)
    jax.block_until_ready(out_f32)
    ref_f32 = reference_forward(t, x, *params, compute_dtype=jnp.float32)
    assert out_f32.shape == (B, 1)
    assert jnp.allclose(out_f32, ref_f32, atol=1e-4, rtol=1e-4)

    # Case 2: bf16 MXU operands (recommended on v5e/v6e/v7x); elementwise math stays f32.
    out_bf16 = neuralnet_forward(t, x, *params, compute_dtype=jnp.bfloat16)
    jax.block_until_ready(out_bf16)
    ref_bf16 = reference_forward(t, x, *params, compute_dtype=jnp.bfloat16)
    assert jnp.allclose(out_bf16, ref_bf16, atol=5e-3, rtol=5e-3)
    assert jnp.allclose(out_bf16, ref_f32, atol=5e-2, rtol=5e-2)

    # Case 3: multi-tile grid + batch/lane padding + out_dim > 1 (MXU final-layer path).
    params2 = init_params(jax.random.fold_in(kp, 7), layer_width, n_layers, input_dim, 2)
    B2 = 300
    t2 = jax.random.uniform(jax.random.fold_in(kt, 1), (B2, 1), jnp.float32)
    x2 = jax.random.normal(jax.random.fold_in(kx, 1), (B2, input_dim), jnp.float32)
    out2 = neuralnet_forward(t2, x2, *params2, block_rows=128,
                             compute_dtype=jnp.float32)   # grid=(3,), 84 padded cols
    jax.block_until_ready(out2)
    ref2 = reference_forward(t2, x2, *params2, compute_dtype=jnp.float32)
    assert out2.shape == (B2, 2)
    assert jnp.allclose(out2, ref2, atol=1e-4, rtol=1e-4)

    print("KERNEL_OK")
</pallas_src>

<mosaic_0001>
module attributes {stable_mosaic.version = 11 : i64} {
  func.func @kernel(%arg0: i32, %arg1: memref<8x128xf32, #tpu.memory_space<vmem>>, %arg2: memref<128x8xf32, #tpu.memory_space<vmem>>, %arg3: memref<32x1xf32, #tpu.memory_space<vmem>>, %arg4: memref<2x96x32xf32, #tpu.memory_space<vmem>>, %arg5: memref<2x96x1xf32, #tpu.memory_space<vmem>>, %arg6: memref<3x96x1xf32, #tpu.memory_space<vmem>>, %arg7: memref<32x1xf32, #tpu.memory_space<vmem>>, %arg8: memref<1x1xf32, #tpu.memory_space<vmem>>, %arg9: memref<1x128xf32, #tpu.memory_space<vmem>>) attributes {dimension_semantics = [#tpu.dimension_semantics<parallel>], iteration_bounds = array<i64: 1>, scalar_prefetch = 0 : i64, scratch_operands = 0 : i64, tpu.core_type = #tpu.core_type<tc>, window_params = [{transform_indices = @transform_0, window_bounds = array<i64: 8, 128>}, {pipeline_mode = #tpu.pipeline_mode<synchronous>, transform_indices = @transform_1, window_bounds = array<i64: 128, 8>}, {pipeline_mode = #tpu.pipeline_mode<synchronous>, transform_indices = @transform_2, window_bounds = array<i64: 32, 1>}, {pipeline_mode = #tpu.pipeline_mode<synchronous>, transform_indices = @transform_3, window_bounds = array<i64: 2, 96, 32>}, {pipeline_mode = #tpu.pipeline_mode<synchronous>, transform_indices = @transform_4, window_bounds = array<i64: 2, 96, 1>}, {pipeline_mode = #tpu.pipeline_mode<synchronous>, transform_indices = @transform_5, window_bounds = array<i64: 3, 96, 1>}, {pipeline_mode = #tpu.pipeline_mode<synchronous>, transform_indices = @transform_6, window_bounds = array<i64: 32, 1>}, {pipeline_mode = #tpu.pipeline_mode<synchronous>, transform_indices = @transform_7, window_bounds = array<i64: 1, 1>}, {transform_indices = @transform_8, window_bounds = array<i64: 1, 128>}]} {
    %c0 = arith.constant 0 : index
    %c0_0 = arith.constant 0 : index
    %0 = vector.load %arg1[%c0, %c0_0] : memref<8x128xf32, #tpu.memory_space<vmem>>, vector<8x128xf32>
    %c0_1 = arith.constant 0 : index
    %c0_2 = arith.constant 0 : index
    %1 = vector.load %arg2[%c0_1, %c0_2] : memref<128x8xf32, #tpu.memory_space<vmem>>, vector<128x8xf32>
    %cst = arith.constant dense<0.000000e+00> : vector<128x128xf32>
    %2 = tpu.matmul %1, %0, %cst {dimension_numbers = #tpu.dot_dimension_numbers<[1], [0], [0], [1], [0, 0, 1, 1], [], []>} : vector<128x8xf32>, vector<8x128xf32>, vector<128x128xf32> -> vector<128x128xf32>
    %3 = vector.extract_strided_slice %2 {offsets = [0, 0], sizes = [32, 128], strides = [1, 1]} : vector<128x128xf32> to vector<32x128xf32>
    %c0_3 = arith.constant 0 : index
    %c0_4 = arith.constant 0 : index
    %4 = vector.load %arg3[%c0_3, %c0_4] : memref<32x1xf32, #tpu.memory_space<vmem>>, vector<32x1xf32>
    %5 = vector.broadcast %4 : vector<32x1xf32> to vector<32x128xf32>
    %6 = arith.addf %3, %5 : vector<32x128xf32>
    %7 = math.tanh %6 : vector<32x128xf32>
    %8 = vector.extract_strided_slice %2 {offsets = [32, 0], sizes = [96, 128], strides = [1, 1]} : vector<128x128xf32> to vector<96x128xf32>
    %c0_5 = arith.constant 0 : index
    %c0_6 = arith.constant 0 : index
    %c0_7 = arith.constant 0 : index
    %9 = vector.load %arg6[%c0_5, %c0_6, %c0_7] : memref<3x96x1xf32, #tpu.memory_space<vmem>>, vector<1x96x1xf32>
    %10 = vector.shape_cast %9 : vector<1x96x1xf32> to vector<96x1xf32>
    %c1 = arith.constant 1 : index
    %c0_8 = arith.constant 0 : index
    %c0_9 = arith.constant 0 : index
    %11 = vector.load %arg6[%c1, %c0_8, %c0_9] : memref<3x96x1xf32, #tpu.memory_space<vmem>>, vector<1x96x1xf32>
    %12 = vector.shape_cast %11 : vector<1x96x1xf32> to vector<96x1xf32>
    %c2 = arith.constant 2 : index
    %c0_10 = arith.constant 0 : index
    %c0_11 = arith.constant 0 : index
    %13 = vector.load %arg6[%c2, %c0_10, %c0_11] : memref<3x96x1xf32, #tpu.memory_space<vmem>>, vector<1x96x1xf32>
    %14 = vector.shape_cast %13 : vector<1x96x1xf32> to vector<96x1xf32>
    %c0_12 = arith.constant 0 : index
    %c0_13 = arith.constant 0 : index
    %c0_14 = arith.constant 0 : index
    %15 = vector.load %arg4[%c0_12, %c0_13, %c0_14] : memref<2x96x32xf32, #tpu.memory_space<vmem>>, vector<1x96x32xf32>
    %16 = vector.shape_cast %15 : vector<1x96x32xf32> to vector<96x32xf32>
    %cst_15 = arith.constant dense<0.000000e+00> : vector<96x128xf32>
    %17 = tpu.matmul %16, %7, %cst_15 {dimension_numbers = #tpu.dot_dimension_numbers<[1], [0], [0], [1], [0, 0, 1, 1], [], []>} : vector<96x32xf32>, vector<32x128xf32>, vector<96x128xf32> -> vector<96x128xf32>
    %c0_16 = arith.constant 0 : index
    %c0_17 = arith.constant 0 : index
    %c0_18 = arith.constant 0 : index
    %18 = vector.load %arg5[%c0_16, %c0_17, %c0_18] : memref<2x96x1xf32, #tpu.memory_space<vmem>>, vector<1x96x1xf32>
    %19 = vector.shape_cast %18 : vector<1x96x1xf32> to vector<96x1xf32>
    %20 = vector.broadcast %19 : vector<96x1xf32> to vector<96x128xf32>
    %21 = arith.addf %17, %20 : vector<96x128xf32>
    %22 = arith.addf %21, %8 : vector<96x128xf32>
    %23 = vector.broadcast %10 : vector<96x1xf32> to vector<96x128xf32>
    %24 = arith.mulf %23, %22 : vector<96x128xf32>
    %25 = math.tanh %24 : vector<96x128xf32>
    %26 = vector.broadcast %12 : vector<96x1xf32> to vector<96x128xf32>
    %27 = arith.mulf %26, %25 : vector<96x128xf32>
    %28 = vector.broadcast %14 : vector<96x1xf32> to vector<96x128xf32>
    %29 = arith.addf %28, %27 : vector<96x128xf32>
    %30 = vector.extract_strided_slice %29 {offsets = [0, 0], sizes = [32, 128], strides = [1, 1]} : vector<96x128xf32> to vector<32x128xf32>
    %31 = vector.extract_strided_slice %29 {offsets = [32, 0], sizes = [32, 128], strides = [1, 1]} : vector<96x128xf32> to vector<32x128xf32>
    %32 = vector.extract_strided_slice %29 {offsets = [64, 0], sizes = [32, 128], strides = [1, 1]} : vector<96x128xf32> to vector<32x128xf32>
    %33 = arith.mulf %30, %31 : vector<32x128xf32>
    %34 = math.tanh %33 : vector<32x128xf32>
    %35 = arith.mulf %32, %34 : vector<32x128xf32>
    %c1_19 = arith.constant 1 : index
    %c0_20 = arith.constant 0 : index
    %c0_21 = arith.constant 0 : index
    %36 = vector.load %arg4[%c1_19, %c0_20, %c0_21] : memref<2x96x32xf32, #tpu.memory_space<vmem>>, vector<1x96x32xf32>
    %37 = vector.shape_cast %36 : vector<1x96x32xf32> to vector<96x32xf32>
    %cst_22 = arith.constant dense<0.000000e+00> : vector<96x128xf32>
    %38 = tpu.matmul %37, %35, %cst_22 {dimension_numbers = #tpu.dot_dimension_numbers<[1], [0], [0], [1], [0, 0, 1, 1], [], []>} : vector<96x32xf32>, vector<32x128xf32>, vector<96x128xf32> -> vector<96x128xf32>
    %c1_23 = arith.constant 1 : index
    %c0_24 = arith.constant 0 : index
    %c0_25 = arith.constant 0 : index
    %39 = vector.load %arg5[%c1_23, %c0_24, %c0_25] : memref<2x96x1xf32, #tpu.memory_space<vmem>>, vector<1x96x1xf32>
    %40 = vector.shape_cast %39 : vector<1x96x1xf32> to vector<96x1xf32>
    %41 = vector.broadcast %40 : vector<96x1xf32> to vector<96x128xf32>
    %42 = arith.addf %38, %41 : vector<96x128xf32>
    %43 = vector.broadcast %10 : vector<96x1xf32> to vector<96x128xf32>
    %44 = arith.mulf %43, %42 : vector<96x128xf32>
    %45 = math.tanh %44 : vector<96x128xf32>
    %46 = vector.broadcast %12 : vector<96x1xf32> to vector<96x128xf32>
    %47 = arith.mulf %46, %45 : vector<96x128xf32>
    %48 = vector.broadcast %14 : vector<96x1xf32> to vector<96x128xf32>
    %49 = arith.addf %48, %47 : vector<96x128xf32>
    %50 = vector.extract_strided_slice %49 {offsets = [0, 0], sizes = [32, 128], strides = [1, 1]} : vector<96x128xf32> to vector<32x128xf32>
    %51 = vector.extract_strided_slice %49 {offsets = [32, 0], sizes = [32, 128], strides = [1, 1]} : vector<96x128xf32> to vector<32x128xf32>
    %52 = vector.extract_strided_slice %49 {offsets = [64, 0], sizes = [32, 128], strides = [1, 1]} : vector<96x128xf32> to vector<32x128xf32>
    %53 = arith.mulf %50, %51 : vector<32x128xf32>
    %54 = math.tanh %53 : vector<32x128xf32>
    %55 = arith.mulf %52, %54 : vector<32x128xf32>
    %c0_26 = arith.constant 0 : index
    %c0_27 = arith.constant 0 : index
    %56 = vector.load %arg7[%c0_26, %c0_27] : memref<32x1xf32, #tpu.memory_space<vmem>>, vector<32x1xf32>
    %57 = vector.broadcast %56 : vector<32x1xf32> to vector<32x128xf32>
    %58 = arith.mulf %55, %57 : vector<32x128xf32>
    %cst_28 = arith.constant dense<0.000000e+00> : vector<128xf32>
    %59 = vector.multi_reduction <add>, %58, %cst_28 [0] : vector<32x128xf32> to vector<128xf32>
    %60 = vector.shape_cast %59 : vector<128xf32> to vector<1x128xf32>
    %c0_29 = arith.constant 0 : index
    %c0_30 = arith.constant 0 : index
    %61 = vector.load %arg8[%c0_29, %c0_30] : memref<1x1xf32, #tpu.memory_space<vmem>>, vector<1x1xf32>
    %62 = vector.broadcast %61 : vector<1x1xf32> to vector<1x128xf32>
    %63 = arith.addf %60, %62 : vector<1x128xf32>
    %c0_31 = arith.constant 0 : index
    %c0_32 = arith.constant 0 : index
    %64 = vector.load %arg9[%c0_31, %c0_32] : memref<1x128xf32, #tpu.memory_space<vmem>>, vector<1x128xf32>
    tpu.vector_store %arg9[%c0_31, %c0_32], %63 {strides = array<i32>} : memref<1x128xf32, #tpu.memory_space<vmem>>, vector<1x128xf32>,
    return
  }
  func.func @transform_0(%arg0: i32) -> (i32, i32) {
    %c0_i32 = arith.constant 0 : i32
    %c0_i32_0 = arith.constant 0 : i32
    return %c0_i32, %arg0 : i32, i32
  }
  func.func @transform_1(%arg0: i32) -> (i32, i32) {
    %c0_i32 = arith.constant 0 : i32
    %c0_i32_0 = arith.constant 0 : i32
    %c0_i32_1 = arith.constant 0 : i32
    return %c0_i32, %c0_i32_0 : i32, i32
  }
  func.func @transform_2(%arg0: i32) -> (i32, i32) {
    %c0_i32 = arith.constant 0 : i32
    %c0_i32_0 = arith.constant 0 : i32
    %c0_i32_1 = arith.constant 0 : i32
    return %c0_i32, %c0_i32_0 : i32, i32
  }
  func.func @transform_3(%arg0: i32) -> (i32, i32, i32) {
    %c0_i32 = arith.constant 0 : i32
    %c0_i32_0 = arith.constant 0 : i32
    %c0_i32_1 = arith.constant 0 : i32
    %c0_i32_2 = arith.constant 0 : i32
    return %c0_i32, %c0_i32_0, %c0_i32_1 : i32, i32, i32
  }
  func.func @transform_4(%arg0: i32) -> (i32, i32, i32) {
    %c0_i32 = arith.constant 0 : i32
    %c0_i32_0 = arith.constant 0 : i32
    %c0_i32_1 = arith.constant 0 : i32
    %c0_i32_2 = arith.constant 0 : i32
    return %c0_i32, %c0_i32_0, %c0_i32_1 : i32, i32, i32
  }
  func.func @transform_5(%arg0: i32) -> (i32, i32, i32) {
    %c0_i32 = arith.constant 0 : i32
    %c0_i32_0 = arith.constant 0 : i32
    %c0_i32_1 = arith.constant 0 : i32
    %c0_i32_2 = arith.constant 0 : i32
    return %c0_i32, %c0_i32_0, %c0_i32_1 : i32, i32, i32
  }
  func.func @transform_6(%arg0: i32) -> (i32, i32) {
    %c0_i32 = arith.constant 0 : i32
    %c0_i32_0 = arith.constant 0 : i32
    %c0_i32_1 = arith.constant 0 : i32
    return %c0_i32, %c0_i32_0 : i32, i32
  }
  func.func @transform_7(%arg0: i32) -> (i32, i32) {
    %c0_i32 = arith.constant 0 : i32
    %c0_i32_0 = arith.constant 0 : i32
    %c0_i32_1 = arith.constant 0 : i32
    return %c0_i32, %c0_i32_0 : i32, i32
  }
  func.func @transform_8(%arg0: i32) -> (i32, i32) {
    %c0_i32 = arith.constant 0 : i32
    %c0_i32_0 = arith.constant 0 : i32
    return %c0_i32, %arg0 : i32, i32
  }
}

</mosaic_0001>

<llo_original>
// kernel: neuralnet_forward.1
$region0: #{neuralnet_forward.1}
  #allocation0 [shape = 'u32[]', space=smem, size = 0x4, offset = 0x4, fixed_abs, tag = 'smem constant byte address 0x4 - core index']
  #allocation1 [shape = 'u32[144,128]{1,0:T(1,128)}', space=vmem, size = 0x12000, scoped, tag = 'internal scratch']
  #allocation2 [shape = 'f32[1,1]{1,0:T(1,128)S(1)}', space=vmem, size = 0x200, scoped, tag = 'scoped memory for neuralnet_forward.1']
  %s0 = inlined_call_operand.vmem [shape: f32[8,128], index: 0, kind: input, shape index: {}]
  %s1 = inlined_call_operand.vmem [shape: f32[128,8], index: 1, kind: input, shape index: {}]
  %s2 = inlined_call_operand.vmem [shape: f32[32,1], index: 2, kind: input, shape index: {}]
  %s3 = inlined_call_operand.vmem [shape: f32[2,96,32], index: 3, kind: input, shape index: {}]
  %s4 = inlined_call_operand.vmem [shape: f32[2,96,1], index: 4, kind: input, shape index: {}]
  %s5 = inlined_call_operand.vmem [shape: f32[3,96,1], index: 5, kind: input, shape index: {}]
  %s6 = inlined_call_operand.vmem [shape: f32[32,1], index: 6, kind: input, shape index: {}]
  %s7 = inlined_call_operand.<no memory space> [shape: f32[1,1], index: 7, kind: input, shape index: {}]
  %s8 = inlined_call_operand.vmem [shape: f32[1,128], index: 8, kind: output, shape index: {}]
  %s9 = sld [smem:[#allocation0]]
  $region42: #{neuralnet_forward.1} parent=0
    _
  %s11 = ssub.s32 1, %s9
  %s12 = scalar_select 0, %s11, %s9
  %v13 = vstv %s7
  %14 = vst [vmem:[#allocation2] sm:$0x1] %v13
  // Predicated region
  $region2: #{neuralnet_forward.1} parent=0 // pred_check
    _
  $region3: #{neuralnet_forward.1} parent=0 // pred_check_branch
    %16 = sbr.rel (0) target = $region5
  $region4: #{neuralnet_forward.1} parent=0 // pred_region
    _
  $region5: #{neuralnet_forward.1} parent=0 // pred_fallthru
    _
  // Predicated region
  $region6: #{neuralnet_forward.1} parent=0 // pred_check
    _
  $region7: #{neuralnet_forward.1} parent=0 // pred_check_branch
    %18 = sbr.rel (0) target = $region9
  $region8: #{neuralnet_forward.1} parent=0 // pred_region
    _
  $region9: #{neuralnet_forward.1} parent=0 // pred_fallthru
    _
  // Predicated region
  $region10: #{neuralnet_forward.1} parent=0 // pred_check
    _
  $region11: #{neuralnet_forward.1} parent=0 // pred_check_branch
    %20 = sbr.rel (0) target = $region13
  $region12: #{neuralnet_forward.1} parent=0 // pred_region
    _
  $region13: #{neuralnet_forward.1} parent=0 // pred_fallthru
    _
  // Predicated region
  $region14: #{neuralnet_forward.1} parent=0 // pred_check
    _
  $region15: #{neuralnet_forward.1} parent=0 // pred_check_branch
    %22 = sbr.rel (0) target = $region17
  $region16: #{neuralnet_forward.1} parent=0 // pred_region
    _
  $region17: #{neuralnet_forward.1} parent=0 // pred_fallthru
    _
  // Predicated region
  $region18: #{neuralnet_forward.1} parent=0 // pred_check
    _
  $region19: #{neuralnet_forward.1} parent=0 // pred_check_branch
    %24 = sbr.rel (0) target = $region21
  $region20: #{neuralnet_forward.1} parent=0 // pred_region
    _
  $region21: #{neuralnet_forward.1} parent=0 // pred_fallthru
    _
  // Predicated region
  $region22: #{neuralnet_forward.1} parent=0 // pred_check
    _
  $region23: #{neuralnet_forward.1} parent=0 // pred_check_branch
    %26 = sbr.rel (0) target = $region25
  $region24: #{neuralnet_forward.1} parent=0 // pred_region
    _
  $region25: #{neuralnet_forward.1} parent=0 // pred_fallthru
    _
  // Predicated region
  $region26: #{neuralnet_forward.1} parent=0 // pred_check
    _
  $region27: #{neuralnet_forward.1} parent=0 // pred_check_branch
    %28 = sbr.rel (0) target = $region29
  $region28: #{neuralnet_forward.1} parent=0 // pred_region
    _
  $region29: #{neuralnet_forward.1} parent=0 // pred_fallthru
    _
  // Predicated region
  $region30: #{neuralnet_forward.1} parent=0 // pred_check
    _
  $region31: #{neuralnet_forward.1} parent=0 // pred_check_branch
    %30 = sbr.rel (0) target = $region33
  $region32: #{neuralnet_forward.1} parent=0 // pred_region
    _
  $region33: #{neuralnet_forward.1} parent=0 // pred_fallthru
    _
  %v31 = vld [vmem:[%s0] sm:$0xff]
  %v32 = vld [vmem:[%s1] sm:$0xff]
  %v33 = vld [vmem:[%s1 + $0x8] sm:$0xff]
  %v34 = vld [vmem:[%s1 + $0x10] sm:$0xff]
  %v35 = vld [vmem:[%s1 + $0x18] sm:$0xff]
  %v36 = vld [vmem:[%s1 + $0x20] sm:$0xff]
  %v37 = vld [vmem:[%s1 + $0x28] sm:$0xff]
  %v38 = vld [vmem:[%s1 + $0x30] sm:$0xff]
  %v39 = vld [vmem:[%s1 + $0x38] sm:$0xff]
  %v40 = vld [vmem:[%s1 + $0x40] sm:$0xff]
  %v41 = vld [vmem:[%s1 + $0x48] sm:$0xff]
  %v42 = vld [vmem:[%s1 + $0x50] sm:$0xff]
  %v43 = vld [vmem:[%s1 + $0x58] sm:$0xff]
  %v44 = vld [vmem:[%s1 + $0x60] sm:$0xff]
  %v45 = vld [vmem:[%s1 + $0x68] sm:$0xff]
  %v46 = vld [vmem:[%s1 + $0x70] sm:$0xff]
  %v47 = vld [vmem:[%s1 + $0x78] sm:$0xff]
  %vm48 = vcmask 64512
  %v50 = vsel %vm48, %v32, 0
  %v53 = vsel %vm48, %v33, 0
  %v56 = vsel %vm48, %v34, 0
  %v59 = vsel %vm48, %v35, 0
  %v62 = vsel %vm48, %v36, 0
  %v65 = vsel %vm48, %v37, 0
  %v68 = vsel %vm48, %v38, 0
  %v71 = vsel %vm48, %v39, 0
  %v74 = vsel %vm48, %v40, 0
  %v77 = vsel %vm48, %v41, 0
  %v80 = vsel %vm48, %v42, 0
  %v83 = vsel %vm48, %v43, 0
  %v86 = vsel %vm48, %v44, 0
  %v89 = vsel %vm48, %v45, 0
  %v92 = vsel %vm48, %v46, 0
  %v95 = vsel %vm48, %v47, 0
  %97 = vmatprep.subr.mxu0 0.0
  %98 = vmatpush1.msra.mxu0 %v31
  %99 = vmatprep.subr.mxu0 0.0
  %100 = vmatpush1.msra.mxu0 0.0
  %101 = vmatprep.subr.mxu0 0.0
  %102 = vmatpush1.msra.mxu0 0.0
  %103 = vmatprep.subr.mxu0 0.0
  %104 = vmatpush1.msra.mxu0 0.0
  %105 = vmatprep.subr.mxu0 0.0
  %106 = vmatpush1.msra.mxu0 0.0
  %107 = vmatprep.subr.mxu0 0.0
  %108 = vmatpush1.msra.mxu0 0.0
  %109 = vmatprep.subr.mxu0 0.0
  %110 = vmatpush1.msra.mxu0 0.0
  %111 = vmatprep.subr.mxu0 0.0
  %112 = vmatpush1.msra.mxu0 0.0
  %113 = vmatprep.subr.mxu0 0.0
  %114 = vmatpush1.msra.mxu0 0.0
  %115 = vmatprep.subr.mxu0 0.0
  %116 = vmatpush1.msra.mxu0 0.0
  %117 = vmatprep.subr.mxu0 0.0
  %118 = vmatpush1.msra.mxu0 0.0
  %119 = vmatprep.subr.mxu0 0.0
  %120 = vmatpush1.msra.mxu0 0.0
  %121 = vmatprep.subr.mxu0 0.0
  %122 = vmatpush1.msra.mxu0 0.0
  %123 = vmatprep.subr.mxu0 0.0
  %124 = vmatpush1.msra.mxu0 0.0
  %125 = vmatprep.subr.mxu0 0.0
  %126 = vmatpush1.msra.mxu0 0.0
  %127 = vmatprep.subr.mxu0 0.0
  %128 = vmatpush1.msra.mxu0 0.0
  %129 = vmatprep.subr.mxu0 0.0
  %130 = vmatpush1.msra.mxu0 0.0
  %131 = vmatprep.subr.mxu0 0.0
  %132 = vmatpush1.msra.mxu0 0.0
  %133 = vmatprep.subr.mxu0 0.0
  %134 = vmatpush1.msra.mxu0 0.0
  %135 = vmatprep.subr.mxu0 0.0
  %136 = vmatpush1.msra.mxu0 0.0
  %137 = vmatprep.subr.mxu0 0.0
  %138 = vmatpush1.msra.mxu0 0.0
  %139 = vmatprep.subr.mxu0 0.0
  %140 = vmatpush1.msra.mxu0 0.0
  %141 = vmatprep.subr.mxu0 0.0
  %142 = vmatpush1.msra.mxu0 0.0
  %143 = vmatprep.subr.mxu0 0.0
  %144 = vmatpush1.msra.mxu0 0.0
  %145 = vmatprep.subr.mxu0 0.0
  %146 = vmatpush1.msra.mxu0 0.0
  %147 = vmatprep.subr.mxu0 0.0
  %148 = vmatpush1.msra.mxu0 0.0
  %149 = vmatprep.subr.mxu0 0.0
  %150 = vmatpush1.msra.mxu0 0.0
  %151 = vmatprep.subr.mxu0 0.0
  %152 = vmatpush1.msra.mxu0 0.0
  %153 = vmatprep.subr.mxu0 0.0
  %154 = vmatpush1.msra.mxu0 0.0
  %155 = vmatprep.subr.mxu0 0.0
  %156 = vmatpush1.msra.mxu0 0.0
  %157 = vmatprep.subr.mxu0 0.0
  %158 = vmatpush1.msra.mxu0 0.0
  %159 = vmatprep.subr.mxu0 0.0
  %160 = vmatpush1.msra.mxu0 0.0
  %161 = vmatprep.mubr.f32.mxu0 0.0
  %162 = vmatmul.mubr.f32.gmra.mrb[0].mxu0 %v50
  %v163 = vpop.f32.mrb[0].mxu0
  %v164 = vadd.f32 0.0, %v163
  %v165 = vpop.f32.mrb[0].mxu0
  %166 = vmatprep.mubr.f32.mxu0 0.0
  %167 = vmatmul.mubr.f32.gmra.mrb[0].mxu0 %v53
  %v168 = vpop.f32.mrb[0].mxu0
  %v169 = vadd.f32 0.0, %v168
  %v170 = vpop.f32.mrb[0].mxu0
  %171 = vmatprep.mubr.f32.mxu0 0.0
  %172 = vmatmul.mubr.f32.gmra.mrb[0].mxu0 %v56
  %v173 = vpop.f32.mrb[0].mxu0
  %v174 = vadd.f32 0.0, %v173
  %v175 = vpop.f32.mrb[0].mxu0
  %176 = vmatprep.mubr.f32.mxu0 0.0
  %177 = vmatmul.mubr.f32.gmra.mrb[0].mxu0 %v59
  %v178 = vpop.f32.mrb[0].mxu0
  %v179 = vadd.f32 0.0, %v178
  %v180 = vpop.f32.mrb[0].mxu0
  %181 = vmatprep.mubr.f32.mxu0 0.0
  %182 = vmatmul.mubr.f32.gmra.mrb[0].mxu0 %v62
  %v183 = vpop.f32.mrb[0].mxu0
  %v184 = vadd.f32 0.0, %v183
  %v185 = vpop.f32.mrb[0].mxu0
  %186 = vmatprep.mubr.f32.mxu0 0.0
  %187 = vmatmul.mubr.f32.gmra.mrb[0].mxu0 %v65
  %v188 = vpop.f32.mrb[0].mxu0
  %v189 = vadd.f32 0.0, %v188
  %v190 = vpop.f32.mrb[0].mxu0
  %191 = vmatprep.mubr.f32.mxu0 0.0
  %192 = vmatmul.mubr.f32.gmra.mrb[0].mxu0 %v68
  %v193 = vpop.f32.mrb[0].mxu0
  %v194 = vadd.f32 0.0, %v193
  %v195 = vpop.f32.mrb[0].mxu0
  %196 = vmatprep.mubr.f32.mxu0 0.0
  %197 = vmatmul.mubr.f32.gmra.mrb[0].mxu0 %v71
  %v198 = vpop.f32.mrb[0].mxu0
  %v199 = vadd.f32 0.0, %v198
  %v200 = vpop.f32.mrb[0].mxu0
  %201 = vmatprep.mubr.f32.mxu0 0.0
  %202 = vmatmul.mubr.f32.gmra.mrb[0].mxu0 %v74
  %v203 = vpop.f32.mrb[0].mxu0
  %v204 = vadd.f32 0.0, %v203
  %v205 = vpop.f32.mrb[0].mxu0
  %206 = vmatprep.mubr.f32.mxu0 0.0
  %207 = vmatmul.mubr.f32.gmra.mrb[0].mxu0 %v77
  %v208 = vpop.f32.mrb[0].mxu0
  %v209 = vadd.f32 0.0, %v208
  %v210 = vpop.f32.mrb[0].mxu0
  %211 = vmatprep.mubr.f32.mxu0 0.0
  %212 = vmatmul.mubr.f32.gmra.mrb[0].mxu0 %v80
  %v213 = vpop.f32.mrb[0].mxu0
  %v214 = vadd.f32 0.0, %v213
  %v215 = vpop.f32.mrb[0].mxu0
  %216 = vmatprep.mubr.f32.mxu0 0.0
  %217 = vmatmul.mubr.f32.gmra.mrb[0].mxu0 %v83
  %v218 = vpop.f32.mrb[0].mxu0
  %v219 = vadd.f32 0.0, %v218
  %v220 = vpop.f32.mrb[0].mxu0
  %221 = vmatprep.mubr.f32.mxu0 0.0
  %222 = vmatmul.mubr.f32.gmra.mrb[0].mxu0 %v86
  %v223 = vpop.f32.mrb[0].mxu0
  %v224 = vadd.f32 0.0, %v223
  %v225 = vpop.f32.mrb[0].mxu0
  %226 = vmatprep.mubr.f32.mxu0 0.0
  %227 = vmatmul.mubr.f32.gmra.mrb[0].mxu0 %v89
  %v228 = vpop.f32.mrb[0].mxu0
  %v229 = vadd.f32 0.0, %v228
  %v230 = vpop.f32.mrb[0].mxu0
  %231 = vmatprep.mubr.f32.mxu0 0.0
  %232 = vmatmul.mubr.f32.gmra.mrb[0].mxu0 %v92
  %v233 = vpop.f32.mrb[0].mxu0
  %v234 = vadd.f32 0.0, %v233
  %v235 = vpop.f32.mrb[0].mxu0
  %236 = vmatprep.mubr.f32.mxu0 0.0
  %237 = vmatmul.mubr.f32.gmra.mrb[0].mxu0 %v95
  %v238 = vpop.f32.mrb[0].mxu0
  %v239 = vadd.f32 0.0, %v238
  %v240 = vpop.f32.mrb[0].mxu0
  %241 = vdwg.mxu0
  %v242 = vld [vmem:[%s2] sm:$0xff]
  %v243 = vld [vmem:[%s2 + $0x8] sm:$0xff]
  %v244 = vld [vmem:[%s2 + $0x10] sm:$0xff]
  %v245 = vld [vmem:[%s2 + $0x18] sm:$0xff]
  %247 = vset.pattern.permute.xlu0 0
  %248 = vperm.xlu0 %247, %v242
  %v249 = vpop.permute.xlu0 %248
  %252 = vset.pattern.permute.xlu0 0
  %253 = vperm.xlu0 %252, %v243
  %v254 = vpop.permute.xlu0 %253
  %257 = vset.pattern.permute.xlu0 0
  %258 = vperm.xlu0 %257, %v244
  %v259 = vpop.permute.xlu0 %258
  %262 = vset.pattern.permute.xlu0 0
  %263 = vperm.xlu0 %262, %v245
  %v264 = vpop.permute.xlu0 %263
  %v266 = vadd.f32 %v164, %v249
  %v267 = vadd.f32 %v169, %v254
  %v268 = vadd.f32 %v174, %v259
  %v269 = vadd.f32 %v179, %v264
  %v270 = vtanh.pop %v266
  %v271 = vtanh.pop %v267
  %v272 = vtanh.pop %v268
  %v273 = vtanh.pop %v269
  %v274 = vld [vmem:[%s5] sm:$0xff]
  %v275 = vld [vmem:[%s5 + $0x8] sm:$0xff]
  %v276 = vld [vmem:[%s5 + $0x10] sm:$0xff]
  %v277 = vld [vmem:[%s5 + $0x18] sm:$0xff]
  %v278 = vld [vmem:[%s5 + $0x20] sm:$0xff]
  %v279 = vld [vmem:[%s5 + $0x28] sm:$0xff]
  %v280 = vld [vmem:[%s5 + $0x30] sm:$0xff]
  %v281 = vld [vmem:[%s5 + $0x38] sm:$0xff]
  %v282 = vld [vmem:[%s5 + $0x40] sm:$0xff]
  %v283 = vld [vmem:[%s5 + $0x48] sm:$0xff]
  %v284 = vld [vmem:[%s5 + $0x50] sm:$0xff]
  %v285 = vld [vmem:[%s5 + $0x58] sm:$0xff]
  %s286 = scalar_lea.vmem %s5, 96
  %v287 = vld [vmem:[%s286] sm:$0xff]
  %v288 = vld [vmem:[%s286 + $0x8] sm:$0xff]
  %v289 = vld [vmem:[%s286 + $0x10] sm:$0xff]
  %v290 = vld [vmem:[%s286 + $0x18] sm:$0xff]
  %v291 = vld [vmem:[%s286 + $0x20] sm:$0xff]
  %v292 = vld [vmem:[%s286 + $0x28] sm:$0xff]
  %v293 = vld [vmem:[%s286 + $0x30] sm:$0xff]
  %v294 = vld [vmem:[%s286 + $0x38] sm:$0xff]
  %v295 = vld [vmem:[%s286 + $0x40] sm:$0xff]
  %v296 = vld [vmem:[%s286 + $0x48] sm:$0xff]
  %v297 = vld [vmem:[%s286 + $0x50] sm:$0xff]
  %v298 = vld [vmem:[%s286 + $0x58] sm:$0xff]
  %s299 = scalar_lea.vmem %s5, 192
  %v300 = vld [vmem:[%s299] sm:$0xff]
  %v301 = vld [vmem:[%s299 + $0x8] sm:$0xff]
  %v302 = vld [vmem:[%s299 + $0x10] sm:$0xff]
  %v303 = vld [vmem:[%s299 + $0x18] sm:$0xff]
  %v304 = vld [vmem:[%s299 + $0x20] sm:$0xff]
  %v305 = vld [vmem:[%s299 + $0x28] sm:$0xff]
  %v306 = vld [vmem:[%s299 + $0x30] sm:$0xff]
  %v307 = vld [vmem:[%s299 + $0x38] sm:$0xff]
  %v308 = vld [vmem:[%s299 + $0x40] sm:$0xff]
  %v309 = vld [vmem:[%s299 + $0x48] sm:$0xff]
  %v310 = vld [vmem:[%s299 + $0x50] sm:$0xff]
  %v311 = vld [vmem:[%s299 + $0x58] sm:$0xff]
  %v312 = vld [vmem:[%s3] sm:$0xff]
  %v313 = vld [vmem:[%s3 + $0x8] sm:$0xff]
  %v314 = vld [vmem:[%s3 + $0x10] sm:$0xff]
  %v315 = vld [vmem:[%s3 + $0x18] sm:$0xff]
  %v316 = vld [vmem:[%s3 + $0x20] sm:$0xff]
  %v317 = vld [vmem:[%s3 + $0x28] sm:$0xff]
  %v318 = vld [vmem:[%s3 + $0x30] sm:$0xff]
  %v319 = vld [vmem:[%s3 + $0x38] sm:$0xff]
  %v320 = vld [vmem:[%s3 + $0x40] sm:$0xff]
  %v321 = vld [vmem:[%s3 + $0x48] sm:$0xff]
  %v322 = vld [vmem:[%s3 + $0x50] sm:$0xff]
  %v323 = vld [vmem:[%s3 + $0x58] sm:$0xff]
  %v324 = vld [vmem:[%s4] sm:$0xff]
  %v325 = vld [vmem:[%s4 + $0x8] sm:$0xff]
  %v326 = vld [vmem:[%s4 + $0x10] sm:$0xff]
  %v327 = vld [vmem:[%s4 + $0x18] sm:$0xff]
  %v328 = vld [vmem:[%s4 + $0x20] sm:$0xff]
  %v329 = vld [vmem:[%s4 + $0x28] sm:$0xff]
  %v330 = vld [vmem:[%s4 + $0x30] sm:$0xff]
  %v331 = vld [vmem:[%s4 + $0x38] sm:$0xff]
  %v332 = vld [vmem:[%s4 + $0x40] sm:$0xff]
  %v333 = vld [vmem:[%s4 + $0x48] sm:$0xff]
  %v334 = vld [vmem:[%s4 + $0x50] sm:$0xff]
  %v335 = vld [vmem:[%s4 + $0x58] sm:$0xff]
  %337 = vset.pattern.permute.xlu0 0
  %338 = vperm.xlu0 %337, %v324
  %v339 = vpop.permute.xlu0 %338
  %342 = vset.pattern.permute.xlu0 0
  %343 = vperm.xlu0 %342, %v325
  %v344 = vpop.permute.xlu0 %343
  %347 = vset.pattern.permute.xlu0 0
  %348 = vperm.xlu0 %347, %v326
  %v349 = vpop.permute.xlu0 %348
  %352 = vset.pattern.permute.xlu0 0
  %353 = vperm.xlu0 %352, %v327
  %v354 = vpop.permute.xlu0 %353
  %357 = vset.pattern.permute.xlu0 0
  %358 = vperm.xlu0 %357, %v328
  %v359 = vpop.permute.xlu0 %358
  %362 = vset.pattern.permute.xlu0 0
  %363 = vperm.xlu0 %362, %v329
  %v364 = vpop.permute.xlu0 %363
  %367 = vset.pattern.permute.xlu0 0
  %368 = vperm.xlu0 %367, %v330
  %v369 = vpop.permute.xlu0 %368
  %372 = vset.pattern.permute.xlu0 0
  %373 = vperm.xlu0 %372, %v331
  %v374 = vpop.permute.xlu0 %373
  %377 = vset.pattern.permute.xlu0 0
  %378 = vperm.xlu0 %377, %v332
  %v379 = vpop.permute.xlu0 %378
  %382 = vset.pattern.permute.xlu0 0
  %383 = vperm.xlu0 %382, %v333
  %v384 = vpop.permute.xlu0 %383
  %387 = vset.pattern.permute.xlu0 0
  %388 = vperm.xlu0 %387, %v334
  %v389 = vpop.permute.xlu0 %388
  %392 = vset.pattern.permute.xlu0 0
  %393 = vperm.xlu0 %392, %v335
  %v394 = vpop.permute.xlu0 %393
  %vm396 = vcmask 261120
  %v398 = vsel %vm396, %v312, 0
  %v401 = vsel %vm396, %v313, 0
  %v404 = vsel %vm396, %v314, 0
  %v407 = vsel %vm396, %v315, 0
  %v410 = vsel %vm396, %v316, 0
  %v413 = vsel %vm396, %v317, 0
  %v416 = vsel %vm396, %v318, 0
  %v419 = vsel %vm396, %v319, 0
  %v422 = vsel %vm396, %v320, 0
  %v425 = vsel %vm396, %v321, 0
  %v428 = vsel %vm396, %v322, 0
  %v431 = vsel %vm396, %v323, 0
  %433 = vmatprep.subr.mxu0 0.0
  %434 = vmatpush1.msra.mxu0 %v270
  %435 = vmatprep.subr.mxu0 0.0
  %436 = vmatpush1.msra.mxu0 %v271
  %437 = vmatprep.subr.mxu0 0.0
  %438 = vmatpush1.msra.mxu0 %v272
  %439 = vmatprep.subr.mxu0 0.0
  %440 = vmatpush1.msra.mxu0 %v273
  %441 = vmatprep.subr.mxu0 0.0
  %442 = vmatpush1.msra.mxu0 0.0
  %443 = vmatprep.subr.mxu0 0.0
  %444 = vmatpush1.msra.mxu0 0.0
  %445 = vmatprep.subr.mxu0 0.0
  %446 = vmatpush1.msra.mxu0 0.0
  %447 = vmatprep.subr.mxu0 0.0
  %448 = vmatpush1.msra.mxu0 0.0
  %449 = vmatprep.subr.mxu0 0.0
  %450 = vmatpush1.msra.mxu0 0.0
  %451 = vmatprep.subr.mxu0 0.0
  %452 = vmatpush1.msra.mxu0 0.0
  %453 = vmatprep.subr.mxu0 0.0
  %454 = vmatpush1.msra.mxu0 0.0
  %455 = vmatprep.subr.mxu0 0.0
  %456 = vmatpush1.msra.mxu0 0.0
  %457 = vmatprep.subr.mxu0 0.0
  %458 = vmatpush1.msra.mxu0 0.0
  %459 = vmatprep.subr.mxu0 0.0
  %460 = vmatpush1.msra.mxu0 0.0
  %461 = vmatprep.subr.mxu0 0.0
  %462 = vmatpush1.msra.mxu0 0.0
  %463 = vmatprep.subr.mxu0 0.0
  %464 = vmatpush1.msra.mxu0 0.0
  %465 = vmatprep.subr.mxu0 0.0
  %466 = vmatpush1.msra.mxu0 0.0
  %467 = vmatprep.subr.mxu0 0.0
  %468 = vmatpush1.msra.mxu0 0.0
  %469 = vmatprep.subr.mxu0 0.0
  %470 = vmatpush1.msra.mxu0 0.0
  %471 = vmatprep.subr.mxu0 0.0
  %472 = vmatpush1.msra.mxu0 0.0
  %473 = vmatprep.subr.mxu0 0.0
  %474 = vmatpush1.msra.mxu0 0.0
  %475 = vmatprep.subr.mxu0 0.0
  %476 = vmatpush1.msra.mxu0 0.0
  %477 = vmatprep.subr.mxu0 0.0
  %478 = vmatpush1.msra.mxu0 0.0
  %479 = vmatprep.subr.mxu0 0.0
  %480 = vmatpush1.msra.mxu0 0.0
  %481 = vmatprep.subr.mxu0 0.0
  %482 = vmatpush1.msra.mxu0 0.0
  %483 = vmatprep.subr.mxu0 0.0
  %484 = vmatpush1.msra.mxu0 0.0
  %485 = vmatprep.subr.mxu0 0.0
  %486 = vmatpush1.msra.mxu0 0.0
  %487 = vmatprep.subr.mxu0 0.0
  %488 = vmatpush1.msra.mxu0 0.0
  %489 = vmatprep.subr.mxu0 0.0
  %490 = vmatpush1.msra.mxu0 0.0
  %491 = vmatprep.subr.mxu0 0.0
  %492 = vmatpush1.msra.mxu0 0.0
  %493 = vmatprep.subr.mxu0 0.0
  %494 = vmatpush1.msra.mxu0 0.0
  %495 = vmatprep.subr.mxu0 0.0
  %496 = vmatpush1.msra.mxu0 0.0
  %497 = vmatprep.mubr.f32.mxu0 0.0
  %498 = vmatmul.mubr.f32.gmra.mrb[0].mxu0 %v398
  %v499 = vpop.f32.mrb[0].mxu0
  %v500 = vadd.f32 %v339, %v499
  %v501 = vpop.f32.mrb[0].mxu0
  %502 = vmatprep.mubr.f32.mxu0 0.0
  %503 = vmatmul.mubr.f32.gmra.mrb[0].mxu0 %v401
  %v504 = vpop.f32.mrb[0].mxu0
  %v505 = vadd.f32 %v344, %v504
  %v506 = vpop.f32.mrb[0].mxu0
  %507 = vmatprep.mubr.f32.mxu0 0.0
  %508 = vmatmul.mubr.f32.gmra.mrb[0].mxu0 %v404
  %v509 = vpop.f32.mrb[0].mxu0
  %v510 = vadd.f32 %v349, %v509
  %v511 = vpop.f32.mrb[0].mxu0
  %512 = vmatprep.mubr.f32.mxu0 0.0
  %513 = vmatmul.mubr.f32.gmra.mrb[0].mxu0 %v407
  %v514 = vpop.f32.mrb[0].mxu0
  %v515 = vadd.f32 %v354, %v514
  %v516 = vpop.f32.mrb[0].mxu0
  %517 = vmatprep.mubr.f32.mxu0 0.0
  %518 = vmatmul.mubr.f32.gmra.mrb[0].mxu0 %v410
  %v519 = vpop.f32.mrb[0].mxu0
  %v520 = vadd.f32 %v359, %v519
  %v521 = vpop.f32.mrb[0].mxu0
  %522 = vmatprep.mubr.f32.mxu0 0.0
  %523 = vmatmul.mubr.f32.gmra.mrb[0].mxu0 %v413
  %v524 = vpop.f32.mrb[0].mxu0
  %v525 = vadd.f32 %v364, %v524
  %v526 = vpop.f32.mrb[0].mxu0
  %527 = vmatprep.mubr.f32.mxu0 0.0
  %528 = vmatmul.mubr.f32.gmra.mrb[0].mxu0 %v416
  %v529 = vpop.f32.mrb[0].mxu0
  %v530 = vadd.f32 %v369, %v529
  %v531 = vpop.f32.mrb[0].mxu0
  %532 = vmatprep.mubr.f32.mxu0 0.0
  %533 = vmatmul.mubr.f32.gmra.mrb[0].mxu0 %v419
  %v534 = vpop.f32.mrb[0].mxu0
  %v535 = vadd.f32 %v374, %v534
  %v536 = vpop.f32.mrb[0].mxu0
  %537 = vmatprep.mubr.f32.mxu0 0.0
  %538 = vmatmul.mubr.f32.gmra.mrb[0].mxu0 %v422
  %v539 = vpop.f32.mrb[0].mxu0
  %v540 = vadd.f32 %v379, %v539
  %v541 = vpop.f32.mrb[0].mxu0
  %542 = vmatprep.mubr.f32.mxu0 0.0
  %543 = vmatmul.mubr.f32.gmra.mrb[0].mxu0 %v425
  %v544 = vpop.f32.mrb[0].mxu0
  %v545 = vadd.f32 %v384, %v544
  %v546 = vpop.f32.mrb[0].mxu0
  %547 = vmatprep.mubr.f32.mxu0 0.0
  %548 = vmatmul.mubr.f32.gmra.mrb[0].mxu0 %v428
  %v549 = vpop.f32.mrb[0].mxu0
  %v550 = vadd.f32 %v389, %v549
  %v551 = vpop.f32.mrb[0].mxu0
  %552 = vmatprep.mubr.f32.mxu0 0.0
  %553 = vmatmul.mubr.f32.gmra.mrb[0].mxu0 %v431
  %v554 = vpop.f32.mrb[0].mxu0
  %v555 = vadd.f32 %v394, %v554
  %v556 = vpop.f32.mrb[0].mxu0
  %557 = vdwg.mxu0
  %v558 = vadd.f32 %v500, %v184
  %v559 = vadd.f32 %v505, %v189
  %v560 = vadd.f32 %v510, %v194
  %v561 = vadd.f32 %v515, %v199
  %v562 = vadd.f32 %v520, %v204
  %v563 = vadd.f32 %v525, %v209
  %v564 = vadd.f32 %v530, %v214
  %v565 = vadd.f32 %v535, %v219
  %v566 = vadd.f32 %v540, %v224
  %v567 = vadd.f32 %v545, %v229
  %v568 = vadd.f32 %v550, %v234
  %v569 = vadd.f32 %v555, %v239
  %571 = vset.pattern.permute.xlu0 0
  %572 = vperm.xlu0 %571, %v274
  %v573 = vpop.permute.xlu0 %572
  %576 = vset.pattern.permute.xlu0 0
  %577 = vperm.xlu0 %576, %v275
  %v578 = vpop.permute.xlu0 %577
  %581 = vset.pattern.permute.xlu0 0
  %582 = vperm.xlu0 %581, %v276
  %v583 = vpop.permute.xlu0 %582
  %586 = vset.pattern.permute.xlu0 0
  %587 = vperm.xlu0 %586, %v277
  %v588 = vpop.permute.xlu0 %587
  %591 = vset.pattern.permute.xlu0 0
  %592 = vperm.xlu0 %591, %v278
  %v593 = vpop.permute.xlu0 %592
  %596 = vset.pattern.permute.xlu0 0
  %597 = vperm.xlu0 %596, %v279
  %v598 = vpop.permute.xlu0 %597
  %601 = vset.pattern.permute.xlu0 0
  %602 = vperm.xlu0 %601, %v280
  %v603 = vpop.permute.xlu0 %602
  %606 = vset.pattern.permute.xlu0 0
  %607 = vperm.xlu0 %606, %v281
  %v608 = vpop.permute.xlu0 %607
  %611 = vset.pattern.permute.xlu0 0
  %612 = vperm.xlu0 %611, %v282
  %v613 = vpop.permute.xlu0 %612
  %616 = vset.pattern.permute.xlu0 0
  %617 = vperm.xlu0 %616, %v283
  %v618 = vpop.permute.xlu0 %617
  %621 = vset.pattern.permute.xlu0 0
  %622 = vperm.xlu0 %621, %v284
  %v623 = vpop.permute.xlu0 %622
  %626 = vset.pattern.permute.xlu0 0
  %627 = vperm.xlu0 %626, %v285
  %v628 = vpop.permute.xlu0 %627
  %v630 = vmul.f32 %v573, %v558
  %v631 = vmul.f32 %v578, %v559
  %v632 = vmul.f32 %v583, %v560
  %v633 = vmul.f32 %v588, %v561
  %v634 = vmul.f32 %v593, %v562
  %v635 = vmul.f32 %v598, %v563
  %v636 = vmul.f32 %v603, %v564
  %v637 = vmul.f32 %v608, %v565
  %v638 = vmul.f32 %v613, %v566
  %v639 = vmul.f32 %v618, %v567
  %v640 = vmul.f32 %v623, %v568
  %v641 = vmul.f32 %v628, %v569
  %v642 = vtanh.pop %v630
  %v643 = vtanh.pop %v631
  %v644 = vtanh.pop %v632
  %v645 = vtanh.pop %v633
  %v646 = vtanh.pop %v634
  %v647 = vtanh.pop %v635
  %v648 = vtanh.pop %v636
  %v649 = vtanh.pop %v637
  %v650 = vtanh.pop %v638
  %v651 = vtanh.pop %v639
  %v652 = vtanh.pop %v640
  %v653 = vtanh.pop %v641
  %655 = vset.pattern.permute.xlu0 0
  %656 = vperm.xlu0 %655, %v287
  %v657 = vpop.permute.xlu0 %656
  %660 = vset.pattern.permute.xlu0 0
  %661 = vperm.xlu0 %660, %v288
  %v662 = vpop.permute.xlu0 %661
  %665 = vset.pattern.permute.xlu0 0
  %666 = vperm.xlu0 %665, %v289
  %v667 = vpop.permute.xlu0 %666
  %670 = vset.pattern.permute.xlu0 0
  %671 = vperm.xlu0 %670, %v290
  %v672 = vpop.permute.xlu0 %671
  %675 = vset.pattern.permute.xlu0 0
  %676 = vperm.xlu0 %675, %v291
  %v677 = vpop.permute.xlu0 %676
  %680 = vset.pattern.permute.xlu0 0
  %681 = vperm.xlu0 %680, %v292
  %v682 = vpop.permute.xlu0 %681
  %685 = vset.pattern.permute.xlu0 0
  %686 = vperm.xlu0 %685, %v293
  %v687 = vpop.permute.xlu0 %686
  %690 = vset.pattern.permute.xlu0 0
  %691 = vperm.xlu0 %690, %v294
  %v692 = vpop.permute.xlu0 %691
  %695 = vset.pattern.permute.xlu0 0
  %696 = vperm.xlu0 %695, %v295
  %v697 = vpop.permute.xlu0 %696
  %700 = vset.pattern.permute.xlu0 0
  %701 = vperm.xlu0 %700, %v296
  %v702 = vpop.permute.xlu0 %701
  %705 = vset.pattern.permute.xlu0 0
  %706 = vperm.xlu0 %705, %v297
  %v707 = vpop.permute.xlu0 %706
  %710 = vset.pattern.permute.xlu0 0
  %711 = vperm.xlu0 %710, %v298
  %v712 = vpop.permute.xlu0 %711
  %v714 = vmul.f32 %v657, %v642
  %v715 = vmul.f32 %v662, %v643
  %v716 = vmul.f32 %v667, %v644
  %v717 = vmul.f32 %v672, %v645
  %v718 = vmul.f32 %v677, %v646
  %v719 = vmul.f32 %v682, %v647
  %v720 = vmul.f32 %v687, %v648
  %v721 = vmul.f32 %v692, %v649
  %v722 = vmul.f32 %v697, %v650
  %v723 = vmul.f32 %v702, %v651
  %v724 = vmul.f32 %v707, %v652
  %v725 = vmul.f32 %v712, %v653
  %727 = vset.pattern.permute.xlu0 0
  %728 = vperm.xlu0 %727, %v300
  %v729 = vpop.permute.xlu0 %728
  %732 = vset.pattern.permute.xlu0 0
  %733 = vperm.xlu0 %732, %v301
  %v734 = vpop.permute.xlu0 %733
  %737 = vset.pattern.permute.xlu0 0
  %738 = vperm.xlu0 %737, %v302
  %v739 = vpop.permute.xlu0 %738
  %742 = vset.pattern.permute.xlu0 0
  %743 = vperm.xlu0 %742, %v303
  %v744 = vpop.permute.xlu0 %743
  %747 = vset.pattern.permute.xlu0 0
  %748 = vperm.xlu0 %747, %v304
  %v749 = vpop.permute.xlu0 %748
  %752 = vset.pattern.permute.xlu0 0
  %753 = vperm.xlu0 %752, %v305
  %v754 = vpop.permute.xlu0 %753
  %757 = vset.pattern.permute.xlu0 0
  %758 = vperm.xlu0 %757, %v306
  %v759 = vpop.permute.xlu0 %758
  %762 = vset.pattern.permute.xlu0 0
  %763 = vperm.xlu0 %762, %v307
  %v764 = vpop.permute.xlu0 %763
  %767 = vset.pattern.permute.xlu0 0
  %768 = vperm.xlu0 %767, %v308
  %v769 = vpop.permute.xlu0 %768
  %772 = vset.pattern.permute.xlu0 0
  %773 = vperm.xlu0 %772, %v309
  %v774 = vpop.permute.xlu0 %773
  %777 = vset.pattern.permute.xlu0 0
  %778 = vperm.xlu0 %777, %v310
  %v779 = vpop.permute.xlu0 %778
  %782 = vset.pattern.permute.xlu0 0
  %783 = vperm.xlu0 %782, %v311
  %v784 = vpop.permute.xlu0 %783
  %v786 = vadd.f32 %v729, %v714
  %v787 = vadd.f32 %v734, %v715
  %v788 = vadd.f32 %v739, %v716
  %v789 = vadd.f32 %v744, %v717
  %v790 = vadd.f32 %v749, %v718
  %v791 = vadd.f32 %v754, %v719
  %v792 = vadd.f32 %v759, %v720
  %v793 = vadd.f32 %v764, %v721
  %v794 = vadd.f32 %v769, %v722
  %v795 = vadd.f32 %v774, %v723
  %v796 = vadd.f32 %v779, %v724
  %v797 = vadd.f32 %v784, %v725
  %v798 = vmul.f32 %v786, %v790
  %v799 = vmul.f32 %v787, %v791
  %v800 = vmul.f32 %v788, %v792
  %v801 = vmul.f32 %v789, %v793
  %v802 = vtanh.pop %v798
  %v803 = vtanh.pop %v799
  %v804 = vtanh.pop %v800
  %v805 = vtanh.pop %v801
  %v806 = vmul.f32 %v794, %v802
  %v807 = vmul.f32 %v795, %v803
  %v808 = vmul.f32 %v796, %v804
  %v809 = vmul.f32 %v797, %v805
  %s810 = scalar_lea.vmem %s3, 96
  %v811 = vld [vmem:[%s810] sm:$0xff]
  %v812 = vld [vmem:[%s810 + $0x8] sm:$0xff]
  %v813 = vld [vmem:[%s810 + $0x10] sm:$0xff]
  %v814 = vld [vmem:[%s810 + $0x18] sm:$0xff]
  %v815 = vld [vmem:[%s810 + $0x20] sm:$0xff]
  %v816 = vld [vmem:[%s810 + $0x28] sm:$0xff]
  %v817 = vld [vmem:[%s810 + $0x30] sm:$0xff]
  %v818 = vld [vmem:[%s810 + $0x38] sm:$0xff]
  %v819 = vld [vmem:[%s810 + $0x40] sm:$0xff]
  %v820 = vld [vmem:[%s810 + $0x48] sm:$0xff]
  %v821 = vld [vmem:[%s810 + $0x50] sm:$0xff]
  %v822 = vld [vmem:[%s810 + $0x58] sm:$0xff]
  %s823 = scalar_lea.vmem %s4, 96
  %v824 = vld [vmem:[%s823] sm:$0xff]
  %v825 = vld [vmem:[%s823 + $0x8] sm:$0xff]
  %v826 = vld [vmem:[%s823 + $0x10] sm:$0xff]
  %v827 = vld [vmem:[%s823 + $0x18] sm:$0xff]
  %v828 = vld [vmem:[%s823 + $0x20] sm:$0xff]
  %v829 = vld [vmem:[%s823 + $0x28] sm:$0xff]
  %v830 = vld [vmem:[%s823 + $0x30] sm:$0xff]
  %v831 = vld [vmem:[%s823 + $0x38] sm:$0xff]
  %v832 = vld [vmem:[%s823 + $0x40] sm:$0xff]
  %v833 = vld [vmem:[%s823 + $0x48] sm:$0xff]
  %v834 = vld [vmem:[%s823 + $0x50] sm:$0xff]
  %v835 = vld [vmem:[%s823 + $0x58] sm:$0xff]
  %837 = vset.pattern.permute.xlu0 0
  %838 = vperm.xlu0 %837, %v824
  %v839 = vpop.permute.xlu0 %838
  %842 = vset.pattern.permute.xlu0 0
  %843 = vperm.xlu0 %842, %v825
  %v844 = vpop.permute.xlu0 %843
  %847 = vset.pattern.permute.xlu0 0
  %848 = vperm.xlu0 %847, %v826
  %v849 = vpop.permute.xlu0 %848
  %852 = vset.pattern.permute.xlu0 0
  %853 = vperm.xlu0 %852, %v827
  %v854 = vpop.permute.xlu0 %853
  %857 = vset.pattern.permute.xlu0 0
  %858 = vperm.xlu0 %857, %v828
  %v859 = vpop.permute.xlu0 %858
  %862 = vset.pattern.permute.xlu0 0
  %863 = vperm.xlu0 %862, %v829
  %v864 = vpop.permute.xlu0 %863
  %867 = vset.pattern.permute.xlu0 0
  %868 = vperm.xlu0 %867, %v830
  %v869 = vpop.permute.xlu0 %868
  %872 = vset.pattern.permute.xlu0 0
  %873 = vperm.xlu0 %872, %v831
  %v874 = vpop.permute.xlu0 %873
  %877 = vset.pattern.permute.xlu0 0
  %878 = vperm.xlu0 %877, %v832
  %v879 = vpop.permute.xlu0 %878
  %882 = vset.pattern.permute.xlu0 0
  %883 = vperm.xlu0 %882, %v833
  %v884 = vpop.permute.xlu0 %883
  %887 = vset.pattern.permute.xlu0 0
  %888 = vperm.xlu0 %887, %v834
  %v889 = vpop.permute.xlu0 %888
  %892 = vset.pattern.permute.xlu0 0
  %893 = vperm.xlu0 %892, %v835
  %v894 = vpop.permute.xlu0 %893
  %v897 = vsel %vm396, %v811, 0
  %v900 = vsel %vm396, %v812, 0
  %v903 = vsel %vm396, %v813, 0
  %v906 = vsel %vm396, %v814, 0
  %v909 = vsel %vm396, %v815, 0
  %v912 = vsel %vm396, %v816, 0
  %v915 = vsel %vm396, %v817, 0
  %v918 = vsel %vm396, %v818, 0
  %v921 = vsel %vm396, %v819, 0
  %v924 = vsel %vm396, %v820, 0
  %v927 = vsel %vm396, %v821, 0
  %v930 = vsel %vm396, %v822, 0
  %932 = vmatprep.subr.mxu0 0.0
  %933 = vmatpush1.msra.mxu0 %v806
  %934 = vmatprep.subr.mxu0 0.0
  %935 = vmatpush1.msra.mxu0 %v807
  %936 = vmatprep.subr.mxu0 0.0
  %937 = vmatpush1.msra.mxu0 %v808
  %938 = vmatprep.subr.mxu0 0.0
  %939 = vmatpush1.msra.mxu0 %v809
  %940 = vmatprep.subr.mxu0 0.0
  %941 = vmatpush1.msra.mxu0 0.0
  %942 = vmatprep.subr.mxu0 0.0
  %943 = vmatpush1.msra.mxu0 0.0
  %944 = vmatprep.subr.mxu0 0.0
  %945 = vmatpush1.msra.mxu0 0.0
  %946 = vmatprep.subr.mxu0 0.0
  %947 = vmatpush1.msra.mxu0 0.0
  %948 = vmatprep.subr.mxu0 0.0
  %949 = vmatpush1.msra.mxu0 0.0
  %950 = vmatprep.subr.mxu0 0.0
  %951 = vmatpush1.msra.mxu0 0.0
  %952 = vmatprep.subr.mxu0 0.0
  %953 = vmatpush1.msra.mxu0 0.0
  %954 = vmatprep.subr.mxu0 0.0
  %955 = vmatpush1.msra.mxu0 0.0
  %956 = vmatprep.subr.mxu0 0.0
  %957 = vmatpush1.msra.mxu0 0.0
  %958 = vmatprep.subr.mxu0 0.0
  %959 = vmatpush1.msra.mxu0 0.0
  %960 = vmatprep.subr.mxu0 0.0
  %961 = vmatpush1.msra.mxu0 0.0
  %962 = vmatprep.subr.mxu0 0.0
  %963 = vmatpush1.msra.mxu0 0.0
  %964 = vmatprep.subr.mxu0 0.0
  %965 = vmatpush1.msra.mxu0 0.0
  %966 = vmatprep.subr.mxu0 0.0
  %967 = vmatpush1.msra.mxu0 0.0
  %968 = vmatprep.subr.mxu0 0.0
  %969 = vmatpush1.msra.mxu0 0.0
  %970 = vmatprep.subr.mxu0 0.0
  %971 = vmatpush1.msra.mxu0 0.0
  %972 = vmatprep.subr.mxu0 0.0
  %973 = vmatpush1.msra.mxu0 0.0
  %974 = vmatprep.subr.mxu0 0.0
  %975 = vmatpush1.msra.mxu0 0.0
  %976 = vmatprep.subr.mxu0 0.0
  %977 = vmatpush1.msra.mxu0 0.0
  %978 = vmatprep.subr.mxu0 0.0
  %979 = vmatpush1.msra.mxu0 0.0
  %980 = vmatprep.subr.mxu0 0.0
  %981 = vmatpush1.msra.mxu0 0.0
  %982 = vmatprep.subr.mxu0 0.0
  %983 = vmatpush1.msra.mxu0 0.0
  %984 = vmatprep.subr.mxu0 0.0
  %985 = vmatpush1.msra.mxu0 0.0
  %986 = vmatprep.subr.mxu0 0.0
  %987 = vmatpush1.msra.mxu0 0.0
  %988 = vmatprep.subr.mxu0 0.0
  %989 = vmatpush1.msra.mxu0 0.0
  %990 = vmatprep.subr.mxu0 0.0
  %991 = vmatpush1.msra.mxu0 0.0
  %992 = vmatprep.subr.mxu0 0.0
  %993 = vmatpush1.msra.mxu0 0.0
  %994 = vmatprep.subr.mxu0 0.0
  %995 = vmatpush1.msra.mxu0 0.0
  %996 = vmatprep.mubr.f32.mxu0 0.0
  %997 = vmatmul.mubr.f32.gmra.mrb[0].mxu0 %v897
  %v998 = vpop.f32.mrb[0].mxu0
  %v999 = vadd.f32 %v839, %v998
  %v1000 = vpop.f32.mrb[0].mxu0
  %1001 = vmatprep.mubr.f32.mxu0 0.0
  %1002 = vmatmul.mubr.f32.gmra.mrb[0].mxu0 %v900
  %v1003 = vpop.f32.mrb[0].mxu0
  %v1004 = vadd.f32 %v844, %v1003
  %v1005 = vpop.f32.mrb[0].mxu0
  %1006 = vmatprep.mubr.f32.mxu0 0.0
  %1007 = vmatmul.mubr.f32.gmra.mrb[0].mxu0 %v903
  %v1008 = vpop.f32.mrb[0].mxu0
  %v1009 = vadd.f32 %v849, %v1008
  %v1010 = vpop.f32.mrb[0].mxu0
  %1011 = vmatprep.mubr.f32.mxu0 0.0
  %1012 = vmatmul.mubr.f32.gmra.mrb[0].mxu0 %v906
  %v1013 = vpop.f32.mrb[0].mxu0
  %v1014 = vadd.f32 %v854, %v1013
  %v1015 = vpop.f32.mrb[0].mxu0
  %1016 = vmatprep.mubr.f32.mxu0 0.0
  %1017 = vmatmul.mubr.f32.gmra.mrb[0].mxu0 %v909
  %v1018 = vpop.f32.mrb[0].mxu0
  %v1019 = vadd.f32 %v859, %v1018
  %v1020 = vpop.f32.mrb[0].mxu0
  %1021 = vmatprep.mubr.f32.mxu0 0.0
  %1022 = vmatmul.mubr.f32.gmra.mrb[0].mxu0 %v912
  %v1023 = vpop.f32.mrb[0].mxu0
  %v1024 = vadd.f32 %v864, %v1023
  %v1025 = vpop.f32.mrb[0].mxu0
  %1026 = vmatprep.mubr.f32.mxu0 0.0
  %1027 = vmatmul.mubr.f32.gmra.mrb[0].mxu0 %v915
  %v1028 = vpop.f32.mrb[0].mxu0
  %v1029 = vadd.f32 %v869, %v1028
  %v1030 = vpop.f32.mrb[0].mxu0
  %1031 = vmatprep.mubr.f32.mxu0 0.0
  %1032 = vmatmul.mubr.f32.gmra.mrb[0].mxu0 %v918
  %v1033 = vpop.f32.mrb[0].mxu0
  %v1034 = vadd.f32 %v874, %v1033
  %v1035 = vpop.f32.mrb[0].mxu0
  %1036 = vmatprep.mubr.f32.mxu0 0.0
  %1037 = vmatmul.mubr.f32.gmra.mrb[0].mxu0 %v921
  %v1038 = vpop.f32.mrb[0].mxu0
  %v1039 = vadd.f32 %v879, %v1038
  %v1040 = vpop.f32.mrb[0].mxu0
  %1041 = vmatprep.mubr.f32.mxu0 0.0
  %1042 = vmatmul.mubr.f32.gmra.mrb[0].mxu0 %v924
  %v1043 = vpop.f32.mrb[0].mxu0
  %v1044 = vadd.f32 %v884, %v1043
  %v1045 = vpop.f32.mrb[0].mxu0
  %1046 = vmatprep.mubr.f32.mxu0 0.0
  %1047 = vmatmul.mubr.f32.gmra.mrb[0].mxu0 %v927
  %v1048 = vpop.f32.mrb[0].mxu0
  %v1049 = vadd.f32 %v889, %v1048
  %v1050 = vpop.f32.mrb[0].mxu0
  %1051 = vmatprep.mubr.f32.mxu0 0.0
  %1052 = vmatmul.mubr.f32.gmra.mrb[0].mxu0 %v930
  %v1053 = vpop.f32.mrb[0].mxu0
  %v1054 = vadd.f32 %v894, %v1053
  %v1055 = vpop.f32.mrb[0].mxu0
  %1056 = vdwg.mxu0
  %v1057 = vmul.f32 %v573, %v999
  %v1058 = vmul.f32 %v578, %v1004
  %v1059 = vmul.f32 %v583, %v1009
  %v1060 = vmul.f32 %v588, %v1014
  %v1061 = vmul.f32 %v593, %v1019
  %v1062 = vmul.f32 %v598, %v1024
  %v1063 = vmul.f32 %v603, %v1029
  %v1064 = vmul.f32 %v608, %v1034
  %v1065 = vmul.f32 %v613, %v1039
  %v1066 = vmul.f32 %v618, %v1044
  %v1067 = vmul.f32 %v623, %v1049
  %v1068 = vmul.f32 %v628, %v1054
  %v1069 = vtanh.pop %v1057
  %v1070 = vtanh.pop %v1058
  %v1071 = vtanh.pop %v1059
  %v1072 = vtanh.pop %v1060
  %v1073 = vtanh.pop %v1061
  %v1074 = vtanh.pop %v1062
  %v1075 = vtanh.pop %v1063
  %v1076 = vtanh.pop %v1064
  %v1077 = vtanh.pop %v1065
  %v1078 = vtanh.pop %v1066
  %v1079 = vtanh.pop %v1067
  %v1080 = vtanh.pop %v1068
  %v1081 = vmul.f32 %v657, %v1069
  %v1082 = vmul.f32 %v662, %v1070
  %v1083 = vmul.f32 %v667, %v1071
  %v1084 = vmul.f32 %v672, %v1072
  %v1085 = vmul.f32 %v677, %v1073
  %v1086 = vmul.f32 %v682, %v1074
  %v1087 = vmul.f32 %v687, %v1075
  %v1088 = vmul.f32 %v692, %v1076
  %v1089 = vmul.f32 %v697, %v1077
  %v1090 = vmul.f32 %v702, %v1078
  %v1091 = vmul.f32 %v707, %v1079
  %v1092 = vmul.f32 %v712, %v1080
  %v1093 = vadd.f32 %v729, %v1081
  %v1094 = vadd.f32 %v734, %v1082
  %v1095 = vadd.f32 %v739, %v1083
  %v1096 = vadd.f32 %v744, %v1084
  %v1097 = vadd.f32 %v749, %v1085
  %v1098 = vadd.f32 %v754, %v1086
  %v1099 = vadd.f32 %v759, %v1087
  %v1100 = vadd.f32 %v764, %v1088
  %v1101 = vadd.f32 %v769, %v1089
  %v1102 = vadd.f32 %v774, %v1090
  %v1103 = vadd.f32 %v779, %v1091
  %v1104 = vadd.f32 %v784, %v1092
  %v1105 = vmul.f32 %v1093, %v1097
  %v1106 = vmul.f32 %v1094, %v1098
  %v1107 = vmul.f32 %v1095, %v1099
  %v1108 = vmul.f32 %v1096, %v1100
  %v1109 = vtanh.pop %v1105
  %v1110 = vtanh.pop %v1106
  %v1111 = vtanh.pop %v1107
  %v1112 = vtanh.pop %v1108
  %v1113 = vmul.f32 %v1101, %v1109
  %v1114 = vmul.f32 %v1102, %v1110
  %v1115 = vmul.f32 %v1103, %v1111
  %v1116 = vmul.f32 %v1104, %v1112
  %v1117 = vld [vmem:[%s6] sm:$0xff]
  %v1118 = vld [vmem:[%s6 + $0x8] sm:$0xff]
  %v1119 = vld [vmem:[%s6 + $0x10] sm:$0xff]
  %v1120 = vld [vmem:[%s6 + $0x18] sm:$0xff]
  %1122 = vset.pattern.permute.xlu0 0
  %1123 = vperm.xlu0 %1122, %v1117
  %v1124 = vpop.permute.xlu0 %1123
  %1127 = vset.pattern.permute.xlu0 0
  %1128 = vperm.xlu0 %1127, %v1118
  %v1129 = vpop.permute.xlu0 %1128
  %1132 = vset.pattern.permute.xlu0 0
  %1133 = vperm.xlu0 %1132, %v1119
  %v1134 = vpop.permute.xlu0 %1133
  %1137 = vset.pattern.permute.xlu0 0
  %1138 = vperm.xlu0 %1137, %v1120
  %v1139 = vpop.permute.xlu0 %1138
  %v1141 = vmul.f32 %v1113, %v1124
  %v1142 = vmul.f32 %v1114, %v1129
  %v1143 = vmul.f32 %v1115, %v1134
  %v1144 = vmul.f32 %v1116, %v1139
  %v1145 = vadd.f32 %v1141, %v1142
  %v1146 = vadd.f32 %v1145, %v1143
  %v1147 = vadd.f32 %v1146, %v1144
  %v1148 = vrot.slane %v1147, 4
  %v1149 = vadd.f32 %v1147, %v1148
  %v1150 = vrot.slane %v1149, 2
  %v1151 = vadd.f32 %v1149, %v1150
  %v1152 = vrot.slane %v1151, 1
  %v1153 = vadd.f32 %v1151, %v1152
  %v1154 = vld [vmem:[#allocation2] sm:$0x1]
  %1156 = vset.pattern.permute.xlu0 0
  %1157 = vperm.xlu0 %1156, %v1154
  %v1158 = vpop.permute.xlu0 %1157
  %v1160 = vlaneseq
  %v1161 = vshrl.u32 %v1160, 7
  %v1162 = vsub.s32 0, %v1161
  %v1163 = vrot.slane %v1158, %v1162
  %v1164 = vadd.f32 %v1153, %v1163
  %1165 = vst [vmem:[%s8] sm:$0x1] %v1164
  // Predicated region
  $region34: #{neuralnet_forward.1} parent=0 // pred_check
    _
  $region35: #{neuralnet_forward.1} parent=0 // pred_check_branch
    %1167 = sbr.rel (0) target = $region37
  $region36: #{neuralnet_forward.1} parent=0 // pred_region
    _
  $region37: #{neuralnet_forward.1} parent=0 // pred_fallthru
    _
  // Predicated region
  $region38: #{neuralnet_forward.1} parent=0 // pred_check
    _
  $region39: #{neuralnet_forward.1} parent=0 // pred_check_branch
    %1169 = sbr.rel (0) target = $region41
  $region40: #{neuralnet_forward.1} parent=0 // pred_region
    _
  $region41: #{neuralnet_forward.1} parent=0 // pred_fallthru
    _

</llo_original>
